<compile_context>
chip_gen: v5e
topology: v5e:2x2
jax: 0.10.0
libtpu: 0.0.40
codegen_flags: <defaults>
</compile_context>

<pallas_src>
import jax
import jax.numpy as jnp
from jax.experimental import pallas as pl
from jax.experimental.pallas import tpu as pltpu


def _im2col_matmul_kernel(x_ref, w_ref, b_ref, a_ref, o_ref):
    # x_ref: (1, TM, KC)   bf16  -- im2col rows for one M-tile of one batch element
    # w_ref: (KC, Cout)    bf16  -- reshaped conv weight
    # b_ref: (1, Cout)     f32   -- bias
    # a_ref: (1,)          f32   -- PReLU alpha (SMEM)
    # o_ref: (1, TM, Cout) f32
    acc = jnp.dot(x_ref[0], w_ref[...], preferred_element_type=jnp.float32)
    acc = acc + b_ref[...]                       # broadcast (1, Cout)
    alpha = a_ref[0]
    o_ref[0] = jnp.where(acc >= 0, acc, alpha * acc).astype(o_ref.dtype)


def subpixel_conv_block_3d(x_ncdhw, w_oidhw, bias, alpha, scale, *, tile_m=128):
    """Forward pass of SubPixelConvolutionalBlock3d.

    x_ncdhw: (N, Cin, D, H, W)       -- PyTorch NCDHW input
    w_oidhw: (Cout, Cin, K, K, K)    -- PyTorch Conv3d weight
    bias:    (Cout,)
    alpha:   (1,)                    -- PReLU weight (single shared parameter)
    returns: (N, Cout // scale**3, D*scale, H*scale, W*scale)  (NCDHW)
    """
    N, Cin, D, H, W = x_ncdhw.shape
    Cout, _, K, _, _ = w_oidhw.shape
    pad = K // 2

    # ---- layout glue + im2col (plain JAX) ----
    x = jnp.transpose(x_ncdhw, (0, 2, 3, 4, 1))                       # NDHWC
    xp = jnp.pad(x, ((0, 0), (pad, pad), (pad, pad), (pad, pad), (0, 0)))
    patches = []
    for kd in range(K):
        for kh in range(K):
            for kw in range(K):
                patches.append(xp[:, kd:kd + D, kh:kh + H, kw:kw + W, :])
    KC = K * K * K * Cin
    M = D * H * W
    cols = jnp.concatenate(patches, axis=-1)                          # (N, D, H, W, KC)
    cols = cols.reshape(N, M, KC).astype(jnp.bfloat16)                # lane-dense rows

    # weight: (Cout, Cin, K, K, K) -> (K, K, K, Cin, Cout) -> (KC, Cout); column order
    # ((kd*K + kh)*K + kw)*Cin + c matches the patch concatenation order above.
    w_mat = jnp.transpose(w_oidhw, (2, 3, 4, 1, 0)).reshape(KC, Cout)
    w_mat = w_mat.astype(jnp.bfloat16)
    b2 = bias.reshape(1, Cout).astype(jnp.float32)

    # M tiling (pad M up to a multiple of TM; padded rows are sliced off afterwards).
    TM = min(tile_m, M)
    M_pad = pl.cdiv(M, TM) * TM
    if M_pad != M:
        cols = jnp.pad(cols, ((0, 0), (0, M_pad - M), (0, 0)))

    conv_out = pl.pallas_call(
        _im2col_matmul_kernel,
        out_shape=jax.ShapeDtypeStruct((N, M_pad, Cout), jnp.float32),
        grid_spec=pltpu.PrefetchScalarGridSpec(
            num_scalar_prefetch=0,
            grid=(N, M_pad // TM),
            in_specs=[
                pl.BlockSpec((1, TM, KC), lambda n, m: (n, m, 0)),
                pl.BlockSpec((KC, Cout), lambda n, m: (0, 0)),
                pl.BlockSpec((1, Cout), lambda n, m: (0, 0)),
                pl.BlockSpec(memory_space=pltpu.MemorySpace.SMEM),
            ],
            out_specs=pl.BlockSpec((1, TM, Cout), lambda n, m: (n, m, 0)),
        ),
        compiler_params=pltpu.CompilerParams(
            dimension_semantics=("parallel", "parallel"),
            vmem_limit_bytes=32 * 1024 * 1024,
        ),
    )(cols, w_mat, b2, alpha.astype(jnp.float32))

    # ---- PixelShuffle3d (pure layout, plain JAX) ----
    conv_out = conv_out[:, :M, :]
    s = scale
    n_out = Cout // (s ** 3)
    # channel c = co*s^3 + sd*s^2 + sh*s + sw  (PyTorch view order)
    y = conv_out.reshape(N, D, H, W, n_out, s, s, s)
    y = jnp.transpose(y, (0, 4, 1, 5, 2, 6, 3, 7))    # (N, co, d, sd, h, sh, w, sw)
    y = y.reshape(N, n_out, D * s, H * s, W * s)      # NCDHW output
    return y


def _reference(x_ncdhw, w_oidhw, bias, alpha, scale):
    """Pure-JAX reference reproducing the PyTorch forward (operands bf16-quantized to
    match the kernel's bf16-operand / f32-accumulate matmul)."""
    N, Cin, D, H, W = x_ncdhw.shape
    Cout, _, K, _, _ = w_oidhw.shape
    pad = K // 2
    xq = x_ncdhw.astype(jnp.bfloat16).astype(jnp.float32)
    wq = w_oidhw.astype(jnp.bfloat16).astype(jnp.float32)
    conv = jax.lax.conv_general_dilated(
        xq, wq,
        window_strides=(1, 1, 1),
        padding=[(pad, pad)] * 3,
        dimension_numbers=("NCDHW", "OIDHW", "NCDHW"),
        precision=jax.lax.Precision.HIGHEST,
    ) + bias.reshape(1, Cout, 1, 1, 1).astype(jnp.float32)
    s = scale
    n_out = Cout // (s ** 3)
    v = conv.reshape(N, n_out, s, s, s, D, H, W)
    v = jnp.transpose(v, (0, 1, 5, 2, 6, 3, 7, 4))
    v = v.reshape(N, n_out, D * s, H * s, W * s)
    return jnp.where(v >= 0, v, alpha[0] * v)


if __name__ == "__main__":
    # Small config consistent with the module: conv_layer_size=16, kernel_size=3, scale=2.
    N, Cin, D, H, W = 2, 16, 8, 8, 8
    K, scale = 3, 2
    Cout = Cin * scale ** 3  # 128

    key = jax.random.PRNGKey(0)
    kx, kw, kb = jax.random.split(key, 3)
    x = jax.random.normal(kx, (N, Cin, D, H, W), dtype=jnp.float32)        # NCDHW
    w = 0.05 * jax.random.normal(kw, (Cout, Cin, K, K, K), dtype=jnp.float32)
    b = 0.05 * jax.random.normal(kb, (Cout,), dtype=jnp.float32)
    alpha = jnp.array([0.25], dtype=jnp.float32)  # PyTorch PReLU default init

    out = subpixel_conv_block_3d(x, w, b, alpha, scale)
    out = jax.block_until_ready(out)

    ref = jax.block_until_ready(_reference(x, w, b, alpha, scale))
    assert out.shape == (N, Cout // scale ** 3, D * scale, H * scale, W * scale), out.shape
    max_err = float(jnp.max(jnp.abs(out - ref)))
    assert jnp.allclose(out, ref, atol=2e-3, rtol=2e-3), max_err

    print("KERNEL_OK")
</pallas_src>

<mosaic_0001>
module attributes {stable_mosaic.version = 11 : i64} {
  func.func @_im2col_matmul_kernel(%arg0: i32, %arg1: i32, %arg2: memref<1x128x432xbf16, #tpu.memory_space<vmem>>, %arg3: memref<432x128xbf16, #tpu.memory_space<vmem>>, %arg4: memref<1x128xf32, #tpu.memory_space<vmem>>, %arg5: memref<1xf32, #tpu.memory_space<smem>>, %arg6: memref<1x128x128xf32, #tpu.memory_space<vmem>>) attributes {dimension_semantics = [#tpu.dimension_semantics<parallel>, #tpu.dimension_semantics<parallel>], iteration_bounds = array<i64: 2, 4>, scalar_prefetch = 0 : i64, scratch_operands = 0 : i64, tpu.core_type = #tpu.core_type<tc>, window_params = [{transform_indices = @transform_0, window_bounds = array<i64: 1, 128, 432>}, {pipeline_mode = #tpu.pipeline_mode<synchronous>, transform_indices = @transform_1, window_bounds = array<i64: 432, 128>}, {pipeline_mode = #tpu.pipeline_mode<synchronous>, transform_indices = @transform_2, window_bounds = array<i64: 1, 128>}, {transform_indices = @transform_3, window_bounds = array<i64: 1>}, {transform_indices = @transform_4, window_bounds = array<i64: 1, 128, 128>}]} {
    %c0 = arith.constant 0 : index
    %c0_0 = arith.constant 0 : index
    %c0_1 = arith.constant 0 : index
    %0 = vector.load %arg2[%c0, %c0_0, %c0_1] : memref<1x128x432xbf16, #tpu.memory_space<vmem>>, vector<1x128x432xbf16>
    %1 = vector.shape_cast %0 : vector<1x128x432xbf16> to vector<128x432xbf16>
    %c0_2 = arith.constant 0 : index
    %c0_3 = arith.constant 0 : index
    %2 = vector.load %arg3[%c0_2, %c0_3] : memref<432x128xbf16, #tpu.memory_space<vmem>>, vector<432x128xbf16>
    %cst = arith.constant dense<0.000000e+00> : vector<128x128xf32>
    %3 = tpu.matmul %1, %2, %cst {dimension_numbers = #tpu.dot_dimension_numbers<[1], [0], [0], [1], [0, 0, 1, 1], [], []>} : vector<128x432xbf16>, vector<432x128xbf16>, vector<128x128xf32> -> vector<128x128xf32>
    %c0_4 = arith.constant 0 : index
    %c0_5 = arith.constant 0 : index
    %4 = vector.load %arg4[%c0_4, %c0_5] : memref<1x128xf32, #tpu.memory_space<vmem>>, vector<1x128xf32>
    %5 = vector.broadcast %4 : vector<1x128xf32> to vector<128x128xf32>
    %6 = arith.addf %3, %5 : vector<128x128xf32>
    %c0_6 = arith.constant 0 : index
    %7 = memref.load %arg5[%c0_6] : memref<1xf32, #tpu.memory_space<smem>>
    %cst_7 = arith.constant 0.000000e+00 : f32
    %8 = vector.broadcast %cst_7 : f32 to vector<128x128xf32>
    %9 = arith.cmpf oge, %6, %8 : vector<128x128xf32>
    %10 = vector.broadcast %7 : f32 to vector<128x128xf32>
    %11 = arith.mulf %10, %6 : vector<128x128xf32>
    %12 = arith.select %9, %6, %11 : vector<128x128xi1>, vector<128x128xf32>
    %c0_8 = arith.constant 0 : index
    %c0_9 = arith.constant 0 : index
    %c0_10 = arith.constant 0 : index
    %13 = vector.load %arg6[%c0_8, %c0_9, %c0_10] : memref<1x128x128xf32, #tpu.memory_space<vmem>>, vector<1x128x128xf32>
    %14 = vector.shape_cast %13 : vector<1x128x128xf32> to vector<128x128xf32>
    %15 = vector.shape_cast %12 : vector<128x128xf32> to vector<1x128x128xf32>
    tpu.vector_store %arg6[%c0_8, %c0_9, %c0_10], %15 {strides = array<i32>} : memref<1x128x128xf32, #tpu.memory_space<vmem>>, vector<1x128x128xf32>,
    return
  }
  func.func @transform_0(%arg0: i32, %arg1: i32) -> (i32, i32, i32) {
    %c0_i32 = arith.constant 0 : i32
    %c0_i32_0 = arith.constant 0 : i32
    return %arg0, %arg1, %c0_i32 : i32, i32, i32
  }
  func.func @transform_1(%arg0: i32, %arg1: i32) -> (i32, i32) {
    %c0_i32 = arith.constant 0 : i32
    %c0_i32_0 = arith.constant 0 : i32
    %c0_i32_1 = arith.constant 0 : i32
    return %c0_i32, %c0_i32_0 : i32, i32
  }
  func.func @transform_2(%arg0: i32, %arg1: i32) -> (i32, i32) {
    %c0_i32 = arith.constant 0 : i32
    %c0_i32_0 = arith.constant 0 : i32
    %c0_i32_1 = arith.constant 0 : i32
    return %c0_i32, %c0_i32_0 : i32, i32
  }
  func.func @transform_3(%arg0: i32, %arg1: i32) -> i32 {
    %c0_i32 = arith.constant 0 : i32
    %c0_i32_0 = arith.constant 0 : i32
    return %c0_i32 : i32
  }
  func.func @transform_4(%arg0: i32, %arg1: i32) -> (i32, i32, i32) {
    %c0_i32 = arith.constant 0 : i32
    %c0_i32_0 = arith.constant 0 : i32
    return %arg0, %arg1, %c0_i32 : i32, i32, i32
  }
}

</mosaic_0001>

<llo_original>
// kernel: tpu_custom_call.1
$region0: #{tpu_custom_call.1}
  #allocation0 [shape = 'u32[]', space=smem, size = 0x4, offset = 0x4, fixed_abs, tag = 'smem constant byte address 0x4 - core index']
  #allocation1 [shape = 'u32[72,128]{1,0:T(1,128)}', space=vmem, size = 0x9000, scoped, tag = 'internal scratch']
  #allocation2 [shape = 'f32[1]{0:T(128)S(6)}', space=smem, size = 0x200, scoped, tag = 'scoped memory for tpu_custom_call.1']
  %s0 = inlined_call_operand.vmem [shape: bf16[2,512,432], index: 0, kind: input, shape index: {}]
  %s1 = inlined_call_operand.vmem [shape: bf16[432,128], index: 1, kind: input, shape index: {}]
  %s2 = inlined_call_operand.vmem [shape: f32[1,128], index: 2, kind: input, shape index: {}]
  %s3 = inlined_call_operand.<no memory space> [shape: f32[1], index: 3, kind: input, shape index: {}]
  %s4 = inlined_call_operand.hbm [shape: f32[2,512,128], index: 4, kind: output, shape index: {}]
  %s5 = sld [smem:[#allocation0]]
  $region49: #{tpu_custom_call.1} parent=0
    _
  %s7 = ssub.s32 1, %s5
  %s8 = scalar_select 0, %s7, %s5
  %9 = sst [smem:[#allocation2]] %s3
  $region1: #{tpu_custom_call.1} parent=0
    #allocation3 [shape = 'u8[131072]{0}', space=vmem, size = 0x20000, scoped, tag = 'output window, operand 0']
    #allocation4 [shape = 's32[2]{0}', space=sflag, size = 0x8, scoped, tag = 'scoped memory for tpu_custom_call.1']
    %10 = vsyncpa [#allocation4], 0
    %s11 = scalar_lea.sflag [#allocation4], 1
    %12 = vsyncpa %s11, 0
    loop: start=0, step=1, limit=10
    $region2: #{tpu_custom_call.1} parent=1 // loop_pre_header
      _
    $region3: #{tpu_custom_call.1} parent=1 // loop_header
      %s14 = sphi 0, %s18
      %p15 = scmp.ge.s32.totalorder %s14, 10
      %s21 = sphi 0, %s33
      %s22 = sphi 0, %s29
      %s23 = sphi 0, %s21
      %s24 = sphi 0, %s22
      %s25 = sphi 0, %s23
      %s26 = sphi 0, %s24
      %s38 = sphi 0, %s40
      %s41 = sphi 0, %s38
      %s42 = sphi 0, %s41
      %s58 = sphi 0, %s42
      %s62 = sphi 0, %s62
      %s64 = sphi 0, %s62
      %s65 = sphi 0, %s64
      %s79 = sphi 0, %s65
      %s83 = sphi 0, %s83
      %s85 = sphi 0, %s83
      %s86 = sphi 0, %s85
      %s100 = sphi 0, %s86
      %s104 = sphi 0, %s104
      %s106 = sphi 0, %s104
      %s107 = sphi 0, %s106
      %s121 = sphi 0, %s107
      %s129 = sphi 0, %s131
      %s132 = sphi 0, %s129
      %s133 = sphi 0, %s132
      %s149 = sphi 0, %s133
    $region4: #{tpu_custom_call.1} parent=1 // loop_header_branch
      %17 = sbr.rel (%p15) target = $region8
    $region5: #{tpu_custom_call.1} parent=1 // loop_body
      %s19 = ssub.s32 %s14, 1
      %s20 = ssub.s32 %s14, 2
      %s27 = sadd.s32 1, %s22
      %p28 = scmp.ge.s32.totalorder %s27, 4
      %s29 = scalar_select %p28, 0, %s27
      %s30 = sadd.s32 1, %s21
      %s31 = scalar_select %p28, %s30, %s21
      %p32 = scmp.ge.s32.totalorder %s31, 2
      %s33 = scalar_select %p32, 0, %s31
      %s34 = ssub.s32 %s21, %s33
      %s35 = ssub.s32 %s22, %s29
      %s36 = sor.u32 %s34, %s35
      %p37 = scmp.eq.s32.totalorder %s36, 0
      %s39 = sadd.s32 %s38, 1
      %s40 = scalar_select %p37, %s38, %s39
      %p43 = pneg %p37
      %p44 = scmp.eq.s32.totalorder %s14, 7
      %p45 = por %p43, %p44
      %p46 = scmp.ne.s32.totalorder %s38, %s41
      %p47 = scmp.eq.s32.totalorder %s14, 0
      %p48 = por %p46, %p47
      %p49 = scmp.ne.s32.totalorder %s38, %s41
      %p50 = scmp.eq.s32.totalorder %s19, 7
      %p51 = por %p49, %p50
      %p52 = scmp.ne.s32.totalorder %s41, %s42
      %p53 = scmp.eq.s32.totalorder %s19, 0
      %p54 = por %p52, %p53
      %p55 = scmp.ne.s32.totalorder %s41, %s42
      %p56 = scmp.eq.s32.totalorder %s20, 7
      %p57 = por %p55, %p56
      %p59 = scmp.ne.s32.totalorder %s42, %s58
      %p60 = scmp.eq.s32.totalorder %s20, 0
      %p61 = por %p59, %p60
      %s63 = sadd.s32 %s62, 1
      %p66 = scmp.eq.s32.totalorder %s14, 7
      %p67 = scmp.ne.s32.totalorder %s62, %s64
      %p68 = scmp.eq.s32.totalorder %s14, 0
      %p69 = por %p67, %p68
      %p70 = scmp.ne.s32.totalorder %s62, %s64
      %p71 = scmp.eq.s32.totalorder %s19, 7
      %p72 = por %p70, %p71
      %p73 = scmp.ne.s32.totalorder %s64, %s65
      %p74 = scmp.eq.s32.totalorder %s19, 0
      %p75 = por %p73, %p74
      %p76 = scmp.ne.s32.totalorder %s64, %s65
      %p77 = scmp.eq.s32.totalorder %s20, 7
      %p78 = por %p76, %p77
      %p80 = scmp.ne.s32.totalorder %s65, %s79
      %p81 = scmp.eq.s32.totalorder %s20, 0
      %p82 = por %p80, %p81
      %s84 = sadd.s32 %s83, 1
      %p87 = scmp.eq.s32.totalorder %s14, 7
      %p88 = scmp.ne.s32.totalorder %s83, %s85
      %p89 = scmp.eq.s32.totalorder %s14, 0
      %p90 = por %p88, %p89
      %p91 = scmp.ne.s32.totalorder %s83, %s85
      %p92 = scmp.eq.s32.totalorder %s19, 7
      %p93 = por %p91, %p92
      %p94 = scmp.ne.s32.totalorder %s85, %s86
      %p95 = scmp.eq.s32.totalorder %s19, 0
      %p96 = por %p94, %p95
      %p97 = scmp.ne.s32.totalorder %s85, %s86
      %p98 = scmp.eq.s32.totalorder %s20, 7
      %p99 = por %p97, %p98
      %p101 = scmp.ne.s32.totalorder %s86, %s100
      %p102 = scmp.eq.s32.totalorder %s20, 0
      %p103 = por %p101, %p102
      %s105 = sadd.s32 %s104, 1
      %p108 = scmp.eq.s32.totalorder %s14, 7
      %p109 = scmp.ne.s32.totalorder %s104, %s106
      %p110 = scmp.eq.s32.totalorder %s14, 0
      %p111 = por %p109, %p110
      %p112 = scmp.ne.s32.totalorder %s104, %s106
      %p113 = scmp.eq.s32.totalorder %s19, 7
      %p114 = por %p112, %p113
      %p115 = scmp.ne.s32.totalorder %s106, %s107
      %p116 = scmp.eq.s32.totalorder %s19, 0
      %p117 = por %p115, %p116
      %p118 = scmp.ne.s32.totalorder %s106, %s107
      %p119 = scmp.eq.s32.totalorder %s20, 7
      %p120 = por %p118, %p119
      %p122 = scmp.ne.s32.totalorder %s107, %s121
      %p123 = scmp.eq.s32.totalorder %s20, 0
      %p124 = por %p122, %p123
      %s125 = ssub.s32 %s21, %s33
      %s126 = ssub.s32 %s22, %s29
      %s127 = sor.u32 %s125, %s126
      %p128 = scmp.eq.s32.totalorder %s127, 0
      %s130 = sadd.s32 %s129, 1
      %s131 = scalar_select %p128, %s129, %s130
      %p134 = pneg %p128
      %p135 = scmp.eq.s32.totalorder %s14, 7
      %p136 = por %p134, %p135
      %p137 = scmp.ne.s32.totalorder %s129, %s132
      %p138 = scmp.eq.s32.totalorder %s14, 0
      %p139 = por %p137, %p138
      %p140 = scmp.ne.s32.totalorder %s129, %s132
      %p141 = scmp.eq.s32.totalorder %s19, 7
      %p142 = por %p140, %p141
      %p143 = scmp.ne.s32.totalorder %s132, %s133
      %p144 = scmp.eq.s32.totalorder %s19, 0
      %p145 = por %p143, %p144
      %p146 = scmp.ne.s32.totalorder %s132, %s133
      %p147 = scmp.eq.s32.totalorder %s20, 7
      %p148 = por %p146, %p147
      %p150 = scmp.ne.s32.totalorder %s133, %s149
      %p151 = scmp.eq.s32.totalorder %s20, 0
      %p152 = por %p150, %p151
      %p153 = scmp.le.s32.totalorder 1, %s14
      %p154 = scmp.lt.s32.totalorder %s14, 9
      %p155 = pnand %p153, %p154
      %p156 = pneg %p155
      // Predicated region
      $region9: #{tpu_custom_call.1} parent=5 // pred_check
        _
      $region10: #{tpu_custom_call.1} parent=5 // pred_check_branch
        %158 = sbr.rel (%p155) target = $region12
      $region11: #{tpu_custom_call.1} parent=5 // pred_region
        %s159 = ssub.s32 %s14, 1
        // Predicated region
        $region13: #{tpu_custom_call.1} parent=11 // pred_check
          %p160 = pneg %p75
        $region14: #{tpu_custom_call.1} parent=11 // pred_check_branch
          %162 = sbr.rel (%p160) target = $region16
        $region15: #{tpu_custom_call.1} parent=11 // pred_region
          _
        $region16: #{tpu_custom_call.1} parent=11 // pred_fallthru
          _
        // Predicated region
        $region17: #{tpu_custom_call.1} parent=11 // pred_check
          %p163 = pneg %p96
        $region18: #{tpu_custom_call.1} parent=11 // pred_check_branch
          %165 = sbr.rel (%p163) target = $region20
        $region19: #{tpu_custom_call.1} parent=11 // pred_region
          _
        $region20: #{tpu_custom_call.1} parent=11 // pred_fallthru
          _
        // Predicated region
        $region21: #{tpu_custom_call.1} parent=11 // pred_check
          %p166 = pneg %p117
        $region22: #{tpu_custom_call.1} parent=11 // pred_check_branch
          %168 = sbr.rel (%p166) target = $region24
        $region23: #{tpu_custom_call.1} parent=11 // pred_region
          _
        $region24: #{tpu_custom_call.1} parent=11 // pred_fallthru
          _
      $region12: #{tpu_custom_call.1} parent=5 // pred_fallthru
        _
      %p169 = scmp.lt.s32.totalorder %s14, 8
      // Predicated region
      $region25: #{tpu_custom_call.1} parent=5 // pred_check
        %p170 = pneg %p169
      $region26: #{tpu_custom_call.1} parent=5 // pred_check_branch
        %172 = sbr.rel (%p170) target = $region28
      $region27: #{tpu_custom_call.1} parent=5 // pred_region
        // Predicated region
        $region29: #{tpu_custom_call.1} parent=27 // pred_check
          %p173 = pneg %p48
        $region30: #{tpu_custom_call.1} parent=27 // pred_check_branch
          %175 = sbr.rel (%p173) target = $region32
        $region31: #{tpu_custom_call.1} parent=27 // pred_region
          %s176 = smul.u32 16, %s22
          %p177 = scmp.lt.s32.totalorder %s21, 1
          %s178 = scalar_select %p177, %s21, 1
          %p179 = scmp.lt.s32.totalorder %s176, 63
          %s180 = scalar_select %p179, %s176, 63
          %s181 = smul.addr %s180, 4
          %s182 = smul.addr %s178, 256
          %s183 = sadd.s32 %s181, %s182
          %s184 = smul.addr %s183, 4
          %s185 = scalar_lea.vmem %s0, %s184
          %s186 = smul.u32 16, %s22
        $region32: #{tpu_custom_call.1} parent=27 // pred_fallthru
          _
      $region28: #{tpu_custom_call.1} parent=5 // pred_fallthru
        _
      %p187 = scmp.le.s32.totalorder 1, %s14
      %p188 = scmp.lt.s32.totalorder %s14, 9
      %p189 = pnand %p187, %p188
      %p190 = pneg %p189
      // Predicated region
      $region33: #{tpu_custom_call.1} parent=5 // pred_check
        _
      $region34: #{tpu_custom_call.1} parent=5 // pred_check_branch
        %192 = sbr.rel (%p189) target = $region36
      $region35: #{tpu_custom_call.1} parent=5 // pred_region
        %s193 = ssub.s32 %s14, 1
        %s194 = smul.u32 16, %s24
        %p195 = scmp.lt.s32.totalorder %s23, 1
        %s196 = scalar_select %p195, %s23, 1
        %p197 = scmp.lt.s32.totalorder %s194, 63
        %s198 = scalar_select %p197, %s194, 63
        %s199 = smul.addr %s198, 4
        %s200 = smul.addr %s196, 256
        %s201 = sadd.s32 %s199, %s200
        %s202 = smul.addr %s201, 4
        %s203 = scalar_lea.vmem %s0, %s202
        %p204 = pneg %p54
        %p205 = pneg %p51
        %p206 = pneg %p75
        %p207 = pneg %p72
        %p208 = pneg %p96
        %p209 = pneg %p93
        %p210 = pneg %p117
        %p211 = pneg %p114
        %p212 = pneg %p145
        %p213 = pneg %p142
        %s214 = sand.u32 %s132, 1
        %s215 = scalar_lea.sflag [#allocation4], %s214
        %s216 = sand.u32 %s132, 1
        %s217 = smul.addr %s216, 128
        %s218 = scalar_lea.vmem [#allocation3], %s217
        %s219 = smul.u32 16, %s24
        %p220 = scmp.lt.s32.totalorder %s23, 1
        %s221 = scalar_select %p220, %s23, 1
        %p222 = scmp.lt.s32.totalorder %s219, 63
        %s223 = scalar_select %p222, %s219, 63
        %s224 = smul.addr %s223, 4
        %s225 = smul.addr %s221, 256
        %s226 = sadd.s32 %s224, %s225
        %s227 = smul.addr %s226, 4
        %s228 = scalar_lea.vmem %s0, %s227
        %s229 = smul.u32 16, %s24
        %s230 = smul.u32 16, %s24
        %v232 = vld [vmem:[%s228] sm:$0xff]
        %v233 = vld [vmem:[%s228 + $0x8] sm:$0xff]
        %v234 = vld [vmem:[%s228 + $0x10] sm:$0xff]
        %v235 = vld [vmem:[%s228 + $0x18] sm:$0xff]
        %v236 = vld [vmem:[%s228 + $0x20] sm:$0xff]
        %v237 = vld [vmem:[%s228 + $0x28] sm:$0xff]
        %v238 = vld [vmem:[%s228 + $0x30] sm:$0xff]
        %v239 = vld [vmem:[%s228 + $0x38] sm:$0xff]
        %v240 = vld [vmem:[%s228 + $0x40] sm:$0xff]
        %v241 = vld [vmem:[%s228 + $0x48] sm:$0xff]
        %v242 = vld [vmem:[%s228 + $0x50] sm:$0xff]
        %v243 = vld [vmem:[%s228 + $0x58] sm:$0xff]
        %v244 = vld [vmem:[%s228 + $0x60] sm:$0xff]
        %v245 = vld [vmem:[%s228 + $0x68] sm:$0xff]
        %v246 = vld [vmem:[%s228 + $0x70] sm:$0xff]
        %v247 = vld [vmem:[%s228 + $0x78] sm:$0xff]
        %v248 = vld [vmem:[%s228 + $0x80] sm:$0xff]
        %v249 = vld [vmem:[%s228 + $0x88] sm:$0xff]
        %v250 = vld [vmem:[%s228 + $0x90] sm:$0xff]
        %v251 = vld [vmem:[%s228 + $0x98] sm:$0xff]
        %v252 = vld [vmem:[%s228 + $0xa0] sm:$0xff]
        %v253 = vld [vmem:[%s228 + $0xa8] sm:$0xff]
        %v254 = vld [vmem:[%s228 + $0xb0] sm:$0xff]
        %v255 = vld [vmem:[%s228 + $0xb8] sm:$0xff]
        %v256 = vld [vmem:[%s228 + $0xc0] sm:$0xff]
        %v257 = vld [vmem:[%s228 + $0xc8] sm:$0xff]
        %v258 = vld [vmem:[%s228 + $0xd0] sm:$0xff]
        %v259 = vld [vmem:[%s228 + $0xd8] sm:$0xff]
        %v260 = vld [vmem:[%s228 + $0xe0] sm:$0xff]
        %v261 = vld [vmem:[%s228 + $0xe8] sm:$0xff]
        %v262 = vld [vmem:[%s228 + $0xf0] sm:$0xff]
        %v263 = vld [vmem:[%s228 + $0xf8] sm:$0xff]
        %v264 = vld [vmem:[%s1] sm:$0xf]
        %v265 = vld [vmem:[%s1 + $0x4] sm:$0xf]
        %v266 = vld [vmem:[%s1 + $0x8] sm:$0xf]
        %v267 = vld [vmem:[%s1 + $0xc] sm:$0xf]
        %v268 = vld [vmem:[%s1 + $0x10] sm:$0xf]
        %v269 = vld [vmem:[%s1 + $0x14] sm:$0xf]
        %v270 = vld [vmem:[%s1 + $0x18] sm:$0xf]
        %v271 = vld [vmem:[%s1 + $0x1c] sm:$0xf]
        %v272 = vld [vmem:[%s1 + $0x20] sm:$0xf]
        %v273 = vld [vmem:[%s1 + $0x24] sm:$0xf]
        %v274 = vld [vmem:[%s1 + $0x28] sm:$0xf]
        %v275 = vld [vmem:[%s1 + $0x2c] sm:$0xf]
        %v276 = vld [vmem:[%s1 + $0x30] sm:$0xf]
        %v277 = vld [vmem:[%s1 + $0x34] sm:$0xf]
        %v278 = vld [vmem:[%s1 + $0x38] sm:$0xf]
        %v279 = vld [vmem:[%s1 + $0x3c] sm:$0xf]
        %v280 = vld [vmem:[%s1 + $0x40] sm:$0xf]
        %v281 = vld [vmem:[%s1 + $0x44] sm:$0xf]
        %v282 = vld [vmem:[%s1 + $0x48] sm:$0xf]
        %v283 = vld [vmem:[%s1 + $0x4c] sm:$0xf]
        %v284 = vld [vmem:[%s1 + $0x50] sm:$0xf]
        %v285 = vld [vmem:[%s1 + $0x54] sm:$0xf]
        %v286 = vld [vmem:[%s1 + $0x58] sm:$0xf]
        %v287 = vld [vmem:[%s1 + $0x5c] sm:$0xf]
        %v288 = vld [vmem:[%s1 + $0x60] sm:$0xf]
        %v289 = vld [vmem:[%s1 + $0x64] sm:$0xf]
        %v290 = vld [vmem:[%s1 + $0x68] sm:$0xf]
        %v291 = vld [vmem:[%s1 + $0x6c] sm:$0xf]
        %v292 = vld [vmem:[%s1 + $0x70] sm:$0xf]
        %v293 = vld [vmem:[%s1 + $0x74] sm:$0xf]
        %v294 = vld [vmem:[%s1 + $0x78] sm:$0xf]
        %v295 = vld [vmem:[%s1 + $0x7c] sm:$0xf]
        %v296 = vld [vmem:[%s1 + $0x80] sm:$0xf]
        %v297 = vld [vmem:[%s1 + $0x84] sm:$0xf]
        %v298 = vld [vmem:[%s1 + $0x88] sm:$0xf]
        %v299 = vld [vmem:[%s1 + $0x8c] sm:$0xf]
        %v300 = vld [vmem:[%s1 + $0x90] sm:$0xf]
        %v301 = vld [vmem:[%s1 + $0x94] sm:$0xf]
        %v302 = vld [vmem:[%s1 + $0x98] sm:$0xf]
        %v303 = vld [vmem:[%s1 + $0x9c] sm:$0xf]
        %v304 = vld [vmem:[%s1 + $0xa0] sm:$0xf]
        %v305 = vld [vmem:[%s1 + $0xa4] sm:$0xf]
        %v306 = vld [vmem:[%s1 + $0xa8] sm:$0xf]
        %v307 = vld [vmem:[%s1 + $0xac] sm:$0xf]
        %v308 = vld [vmem:[%s1 + $0xb0] sm:$0xf]
        %v309 = vld [vmem:[%s1 + $0xb4] sm:$0xf]
        %v310 = vld [vmem:[%s1 + $0xb8] sm:$0xf]
        %v311 = vld [vmem:[%s1 + $0xbc] sm:$0xf]
        %v312 = vld [vmem:[%s1 + $0xc0] sm:$0xf]
        %v313 = vld [vmem:[%s1 + $0xc4] sm:$0xf]
        %v314 = vld [vmem:[%s1 + $0xc8] sm:$0xf]
        %v315 = vld [vmem:[%s1 + $0xcc] sm:$0xf]
        %v316 = vld [vmem:[%s1 + $0xd0] sm:$0xf]
        %v317 = vld [vmem:[%s1 + $0xd4] sm:$0xf]
        %v318 = vld [vmem:[%s2] sm:$0x1]
        %v320 = vperm.slane %v318, 0
        %v354 = vunpack.c.l.b16 %v232
        %v355 = vunpack.c.h.b16 %v232
        %v356 = vunpack.c.l.b16 %v233
        %v357 = vunpack.c.h.b16 %v233
        %v358 = vunpack.c.l.b16 %v234
        %v359 = vunpack.c.h.b16 %v234
        %v360 = vunpack.c.l.b16 %v235
        %v361 = vunpack.c.h.b16 %v235
        %v362 = vunpack.c.l.b16 %v236
        %v363 = vunpack.c.h.b16 %v236
        %v364 = vunpack.c.l.b16 %v237
        %v365 = vunpack.c.h.b16 %v237
        %v366 = vunpack.c.l.b16 %v238
        %v367 = vunpack.c.h.b16 %v238
        %v368 = vunpack.c.l.b16 %v239
        %v369 = vunpack.c.h.b16 %v239
        %v370 = vunpack.c.l.b16 %v240
        %v371 = vunpack.c.h.b16 %v240
        %v372 = vunpack.c.l.b16 %v241
        %v373 = vunpack.c.h.b16 %v241
        %v374 = vunpack.c.l.b16 %v242
        %v375 = vunpack.c.h.b16 %v242
        %v376 = vunpack.c.l.b16 %v243
        %v377 = vunpack.c.h.b16 %v243
        %v378 = vunpack.c.l.b16 %v244
        %v379 = vunpack.c.h.b16 %v244
        %v380 = vunpack.c.l.b16 %v245
        %v381 = vunpack.c.h.b16 %v245
        %v382 = vunpack.c.l.b16 %v246
        %v383 = vunpack.c.h.b16 %v246
        %v384 = vunpack.c.l.b16 %v247
        %v385 = vunpack.c.h.b16 %v247
        %v386 = vunpack.c.l.b16 %v248
        %v387 = vunpack.c.h.b16 %v248
        %v388 = vunpack.c.l.b16 %v249
        %v389 = vunpack.c.h.b16 %v249
        %v390 = vunpack.c.l.b16 %v250
        %v391 = vunpack.c.h.b16 %v250
        %v392 = vunpack.c.l.b16 %v251
        %v393 = vunpack.c.h.b16 %v251
        %v394 = vunpack.c.l.b16 %v252
        %v395 = vunpack.c.h.b16 %v252
        %v396 = vunpack.c.l.b16 %v253
        %v397 = vunpack.c.h.b16 %v253
        %v398 = vunpack.c.l.b16 %v254
        %v399 = vunpack.c.h.b16 %v254
        %v400 = vunpack.c.l.b16 %v255
        %v401 = vunpack.c.h.b16 %v255
        %v402 = vunpack.c.l.b16 %v256
        %v403 = vunpack.c.h.b16 %v256
        %v404 = vunpack.c.l.b16 %v257
        %v405 = vunpack.c.h.b16 %v257
        %v406 = vunpack.c.l.b16 %v258
        %v407 = vunpack.c.h.b16 %v258
        %v408 = vunpack.c.l.b16 %v259
        %v409 = vunpack.c.h.b16 %v259
        %v410 = vunpack.c.l.b16 %v260
        %v411 = vunpack.c.h.b16 %v260
        %v412 = vunpack.c.l.b16 %v261
        %v413 = vunpack.c.h.b16 %v261
        %v414 = vunpack.c.l.b16 %v262
        %v415 = vunpack.c.h.b16 %v262
        %v416 = vunpack.c.l.b16 %v263
        %v417 = vunpack.c.h.b16 %v263
        %v418 = vpack.c.b16 %v358, %v354
        %v419 = vpack.c.b16 %v359, %v355
        %v420 = vpack.c.b16 %v360, %v356
        %v421 = vpack.c.b16 %v361, %v357
        %v422 = vpack.c.b16 %v366, %v362
        %v423 = vpack.c.b16 %v367, %v363
        %v424 = vpack.c.b16 %v368, %v364
        %v425 = vpack.c.b16 %v369, %v365
        %v426 = vpack.c.b16 %v374, %v370
        %v427 = vpack.c.b16 %v375, %v371
        %v428 = vpack.c.b16 %v376, %v372
        %v429 = vpack.c.b16 %v377, %v373
        %v430 = vpack.c.b16 %v382, %v378
        %v431 = vpack.c.b16 %v383, %v379
        %v432 = vpack.c.b16 %v384, %v380
        %v433 = vpack.c.b16 %v385, %v381
        %v434 = vpack.c.b16 %v390, %v386
        %v435 = vpack.c.b16 %v391, %v387
        %v436 = vpack.c.b16 %v392, %v388
        %v437 = vpack.c.b16 %v393, %v389
        %v438 = vpack.c.b16 %v398, %v394
        %v439 = vpack.c.b16 %v399, %v395
        %v440 = vpack.c.b16 %v400, %v396
        %v441 = vpack.c.b16 %v401, %v397
        %v442 = vpack.c.b16 %v406, %v402
        %v443 = vpack.c.b16 %v407, %v403
        %v444 = vpack.c.b16 %v408, %v404
        %v445 = vpack.c.b16 %v409, %v405
        %v446 = vpack.c.b16 %v414, %v410
        %v447 = vpack.c.b16 %v415, %v411
        %v448 = vpack.c.b16 %v416, %v412
        %v449 = vpack.c.b16 %v417, %v413
        %v528 = vunpack.c.l.b16 %v264
        %v529 = vunpack.c.l.b16 %v265
        %v530 = vunpack.c.l.b16 %v266
        %v531 = vunpack.c.l.b16 %v267
        %v532 = vunpack.c.l.b16 %v268
        %v533 = vunpack.c.l.b16 %v269
        %v534 = vunpack.c.l.b16 %v270
        %v535 = vunpack.c.l.b16 %v271
        %v536 = vunpack.c.l.b16 %v272
        %v537 = vunpack.c.l.b16 %v273
        %v538 = vunpack.c.l.b16 %v274
        %v539 = vunpack.c.l.b16 %v275
        %v540 = vunpack.c.l.b16 %v276
        %v541 = vunpack.c.l.b16 %v277
        %v542 = vunpack.c.l.b16 %v278
        %v543 = vunpack.c.l.b16 %v279
        %v544 = vunpack.c.l.b16 %v280
        %v545 = vunpack.c.l.b16 %v281
        %v546 = vunpack.c.l.b16 %v282
        %v547 = vunpack.c.l.b16 %v283
        %v548 = vunpack.c.l.b16 %v284
        %v549 = vunpack.c.l.b16 %v285
        %v550 = vunpack.c.l.b16 %v286
        %v551 = vunpack.c.l.b16 %v287
        %v552 = vunpack.c.l.b16 %v288
        %v553 = vunpack.c.l.b16 %v289
        %v554 = vunpack.c.l.b16 %v290
        %v555 = vunpack.c.l.b16 %v291
        %v556 = vunpack.c.l.b16 %v292
        %v557 = vunpack.c.l.b16 %v293
        %v558 = vunpack.c.l.b16 %v294
        %v559 = vunpack.c.l.b16 %v295
        %v560 = vunpack.c.l.b16 %v296
        %v561 = vunpack.c.l.b16 %v297
        %v562 = vunpack.c.l.b16 %v298
        %v563 = vunpack.c.l.b16 %v299
        %v564 = vunpack.c.l.b16 %v300
        %v565 = vunpack.c.l.b16 %v301
        %v566 = vunpack.c.l.b16 %v302
        %v567 = vunpack.c.l.b16 %v303
        %v568 = vunpack.c.l.b16 %v304
        %v569 = vunpack.c.l.b16 %v305
        %v570 = vunpack.c.l.b16 %v306
        %v571 = vunpack.c.l.b16 %v307
        %v572 = vunpack.c.l.b16 %v308
        %v573 = vunpack.c.l.b16 %v309
        %v574 = vunpack.c.l.b16 %v310
        %v575 = vunpack.c.l.b16 %v311
        %v576 = vunpack.c.l.b16 %v312
        %v577 = vunpack.c.l.b16 %v313
        %v578 = vunpack.c.l.b16 %v314
        %v579 = vunpack.c.l.b16 %v315
        %v580 = vunpack.c.l.b16 %v316
        %v581 = vunpack.c.l.b16 %v317
        %v582 = vpack.c.b16 %v529, %v528
        %v583 = vpack.c.b16 %v531, %v530
        %v584 = vpack.c.b16 %v533, %v532
        %v585 = vpack.c.b16 %v535, %v534
        %v586 = vpack.c.b16 %v537, %v536
        %v587 = vpack.c.b16 %v539, %v538
        %v588 = vpack.c.b16 %v541, %v540
        %v589 = vpack.c.b16 %v543, %v542
        %v590 = vpack.c.b16 %v545, %v544
        %v591 = vpack.c.b16 %v547, %v546
        %v592 = vpack.c.b16 %v549, %v548
        %v593 = vpack.c.b16 %v551, %v550
        %v594 = vpack.c.b16 %v553, %v552
        %v595 = vpack.c.b16 %v555, %v554
        %v596 = vpack.c.b16 %v557, %v556
        %v597 = vpack.c.b16 %v559, %v558
        %v598 = vpack.c.b16 %v561, %v560
        %v599 = vpack.c.b16 %v563, %v562
        %v600 = vpack.c.b16 %v565, %v564
        %v601 = vpack.c.b16 %v567, %v566
        %v602 = vpack.c.b16 %v569, %v568
        %v603 = vpack.c.b16 %v571, %v570
        %v604 = vpack.c.b16 %v573, %v572
        %v605 = vpack.c.b16 %v575, %v574
        %v606 = vpack.c.b16 %v577, %v576
        %v607 = vpack.c.b16 %v579, %v578
        %v608 = vpack.c.b16 %v581, %v580
        %vm636 = vcmask 392192
        %v638 = vsel %vm636, %v421, 0
        %v641 = vsel %vm636, %v425, 0
        %v644 = vsel %vm636, %v429, 0
        %v647 = vsel %vm636, %v433, 0
        %v650 = vsel %vm636, %v437, 0
        %v653 = vsel %vm636, %v441, 0
        %v656 = vsel %vm636, %v445, 0
        %v659 = vsel %vm636, %v449, 0
        %661 = vmatpush.bf16.msra.mxu0 %v589
        %662 = vmatpush.bf16.msra.mxu0 %v588
        %663 = vmatpush.bf16.msra.mxu0 %v587
        %664 = vmatpush.bf16.msra.mxu0 %v586
        %665 = vmatpush.bf16.msra.mxu0 %v585
        %666 = vmatpush.bf16.msra.mxu0 %v584
        %667 = vmatpush.bf16.msra.mxu0 %v583
        %668 = vmatpush.bf16.msra.mxu0 %v582
        %669 = vmatmul.bf16.gmra.mxu0 %v418
        %v670 = vpop.f32.mrf.mxu0
        %v671 = vadd.f32 %v320, %v670
        %v672 = vpop.f32.mrf.mxu0
        %v673 = vadd.f32 %v320, %v672
        %674 = vmatmul.bf16.gmra.mxu0 %v422
        %v675 = vpop.f32.mrf.mxu0
        %v676 = vadd.f32 %v320, %v675
        %v677 = vpop.f32.mrf.mxu0
        %v678 = vadd.f32 %v320, %v677
        %679 = vmatmul.bf16.gmra.mxu0 %v426
        %v680 = vpop.f32.mrf.mxu0
        %v681 = vadd.f32 %v320, %v680
        %v682 = vpop.f32.mrf.mxu0
        %v683 = vadd.f32 %v320, %v682
        %684 = vmatmul.bf16.gmra.mxu0 %v430
        %v685 = vpop.f32.mrf.mxu0
        %v686 = vadd.f32 %v320, %v685
        %v687 = vpop.f32.mrf.mxu0
        %v688 = vadd.f32 %v320, %v687
        %689 = vmatmul.bf16.gmra.mxu0 %v434
        %v690 = vpop.f32.mrf.mxu0
        %v691 = vadd.f32 %v320, %v690
        %v692 = vpop.f32.mrf.mxu0
        %v693 = vadd.f32 %v320, %v692
        %694 = vmatmul.bf16.gmra.mxu0 %v438
        %v695 = vpop.f32.mrf.mxu0
        %v696 = vadd.f32 %v320, %v695
        %v697 = vpop.f32.mrf.mxu0
        %v698 = vadd.f32 %v320, %v697
        %699 = vmatmul.bf16.gmra.mxu0 %v442
        %v700 = vpop.f32.mrf.mxu0
        %v701 = vadd.f32 %v320, %v700
        %v702 = vpop.f32.mrf.mxu0
        %v703 = vadd.f32 %v320, %v702
        %704 = vmatmul.bf16.gmra.mxu0 %v446
        %v705 = vpop.f32.mrf.mxu0
        %v706 = vadd.f32 %v320, %v705
        %v707 = vpop.f32.mrf.mxu0
        %v708 = vadd.f32 %v320, %v707
        %709 = vdwg.mxu0
        %710 = vmatpush.bf16.msra.mxu0 %v597
        %711 = vmatpush.bf16.msra.mxu0 %v596
        %712 = vmatpush.bf16.msra.mxu0 %v595
        %713 = vmatpush.bf16.msra.mxu0 %v594
        %714 = vmatpush.bf16.msra.mxu0 %v593
        %715 = vmatpush.bf16.msra.mxu0 %v592
        %716 = vmatpush.bf16.msra.mxu0 %v591
        %717 = vmatpush.bf16.msra.mxu0 %v590
        %718 = vmatmul.bf16.gmra.mxu0 %v419
        %v719 = vpop.f32.mrf.mxu0
        %v720 = vadd.f32 %v671, %v719
        %v721 = vpop.f32.mrf.mxu0
        %v722 = vadd.f32 %v673, %v721
        %723 = vmatmul.bf16.gmra.mxu0 %v423
        %v724 = vpop.f32.mrf.mxu0
        %v725 = vadd.f32 %v676, %v724
        %v726 = vpop.f32.mrf.mxu0
        %v727 = vadd.f32 %v678, %v726
        %728 = vmatmul.bf16.gmra.mxu0 %v427
        %v729 = vpop.f32.mrf.mxu0
        %v730 = vadd.f32 %v681, %v729
        %v731 = vpop.f32.mrf.mxu0
        %v732 = vadd.f32 %v683, %v731
        %733 = vmatmul.bf16.gmra.mxu0 %v431
        %v734 = vpop.f32.mrf.mxu0
        %v735 = vadd.f32 %v686, %v734
        %v736 = vpop.f32.mrf.mxu0
        %v737 = vadd.f32 %v688, %v736
        %738 = vmatmul.bf16.gmra.mxu0 %v435
        %v739 = vpop.f32.mrf.mxu0
        %v740 = vadd.f32 %v691, %v739
        %v741 = vpop.f32.mrf.mxu0
        %v742 = vadd.f32 %v693, %v741
        %743 = vmatmul.bf16.gmra.mxu0 %v439
        %v744 = vpop.f32.mrf.mxu0
        %v745 = vadd.f32 %v696, %v744
        %v746 = vpop.f32.mrf.mxu0
        %v747 = vadd.f32 %v698, %v746
        %748 = vmatmul.bf16.gmra.mxu0 %v443
        %v749 = vpop.f32.mrf.mxu0
        %v750 = vadd.f32 %v701, %v749
        %v751 = vpop.f32.mrf.mxu0
        %v752 = vadd.f32 %v703, %v751
        %753 = vmatmul.bf16.gmra.mxu0 %v447
        %v754 = vpop.f32.mrf.mxu0
        %v755 = vadd.f32 %v706, %v754
        %v756 = vpop.f32.mrf.mxu0
        %v757 = vadd.f32 %v708, %v756
        %758 = vdwg.mxu0
        %759 = vmatpush.bf16.msra.mxu0 %v605
        %760 = vmatpush.bf16.msra.mxu0 %v604
        %761 = vmatpush.bf16.msra.mxu0 %v603
        %762 = vmatpush.bf16.msra.mxu0 %v602
        %763 = vmatpush.bf16.msra.mxu0 %v601
        %764 = vmatpush.bf16.msra.mxu0 %v600
        %765 = vmatpush.bf16.msra.mxu0 %v599
        %766 = vmatpush.bf16.msra.mxu0 %v598
        %767 = vmatmul.bf16.gmra.mxu0 %v420
        %v768 = vpop.f32.mrf.mxu0
        %v769 = vadd.f32 %v720, %v768
        %v770 = vpop.f32.mrf.mxu0
        %v771 = vadd.f32 %v722, %v770
        %772 = vmatmul.bf16.gmra.mxu0 %v424
        %v773 = vpop.f32.mrf.mxu0
        %v774 = vadd.f32 %v725, %v773
        %v775 = vpop.f32.mrf.mxu0
        %v776 = vadd.f32 %v727, %v775
        %777 = vmatmul.bf16.gmra.mxu0 %v428
        %v778 = vpop.f32.mrf.mxu0
        %v779 = vadd.f32 %v730, %v778
        %v780 = vpop.f32.mrf.mxu0
        %v781 = vadd.f32 %v732, %v780
        %782 = vmatmul.bf16.gmra.mxu0 %v432
        %v783 = vpop.f32.mrf.mxu0
        %v784 = vadd.f32 %v735, %v783
        %v785 = vpop.f32.mrf.mxu0
        %v786 = vadd.f32 %v737, %v785
        %787 = vmatmul.bf16.gmra.mxu0 %v436
        %v788 = vpop.f32.mrf.mxu0
        %v789 = vadd.f32 %v740, %v788
        %v790 = vpop.f32.mrf.mxu0
        %v791 = vadd.f32 %v742, %v790
        %792 = vmatmul.bf16.gmra.mxu0 %v440
        %v793 = vpop.f32.mrf.mxu0
        %v794 = vadd.f32 %v745, %v793
        %v795 = vpop.f32.mrf.mxu0
        %v796 = vadd.f32 %v747, %v795
        %797 = vmatmul.bf16.gmra.mxu0 %v444
        %v798 = vpop.f32.mrf.mxu0
        %v799 = vadd.f32 %v750, %v798
        %v800 = vpop.f32.mrf.mxu0
        %v801 = vadd.f32 %v752, %v800
        %802 = vmatmul.bf16.gmra.mxu0 %v448
        %v803 = vpop.f32.mrf.mxu0
        %v804 = vadd.f32 %v755, %v803
        %v805 = vpop.f32.mrf.mxu0
        %v806 = vadd.f32 %v757, %v805
        %807 = vdwg.mxu0
        %808 = vmatpush.bf16.msra.mxu0 0
        %809 = vmatpush.bf16.msra.mxu0 0
        %810 = vmatpush.bf16.msra.mxu0 0
        %811 = vmatpush.bf16.msra.mxu0 0
        %812 = vmatpush.bf16.msra.mxu0 0
        %813 = vmatpush.bf16.msra.mxu0 %v608
        %814 = vmatpush.bf16.msra.mxu0 %v607
        %815 = vmatpush.bf16.msra.mxu0 %v606
        %816 = vmatmul.bf16.gmra.mxu0 %v638
        %v817 = vpop.f32.mrf.mxu0
        %v818 = vadd.f32 %v769, %v817
        %v819 = vpop.f32.mrf.mxu0
        %v820 = vadd.f32 %v771, %v819
        %821 = vmatmul.bf16.gmra.mxu0 %v641
        %v822 = vpop.f32.mrf.mxu0
        %v823 = vadd.f32 %v774, %v822
        %v824 = vpop.f32.mrf.mxu0
        %v825 = vadd.f32 %v776, %v824
        %826 = vmatmul.bf16.gmra.mxu0 %v644
        %v827 = vpop.f32.mrf.mxu0
        %v828 = vadd.f32 %v779, %v827
        %v829 = vpop.f32.mrf.mxu0
        %v830 = vadd.f32 %v781, %v829
        %831 = vmatmul.bf16.gmra.mxu0 %v647
        %v832 = vpop.f32.mrf.mxu0
        %v833 = vadd.f32 %v784, %v832
        %v834 = vpop.f32.mrf.mxu0
        %v835 = vadd.f32 %v786, %v834
        %836 = vmatmul.bf16.gmra.mxu0 %v650
        %v837 = vpop.f32.mrf.mxu0
        %v838 = vadd.f32 %v789, %v837
        %v839 = vpop.f32.mrf.mxu0
        %v840 = vadd.f32 %v791, %v839
        %841 = vmatmul.bf16.gmra.mxu0 %v653
        %v842 = vpop.f32.mrf.mxu0
        %v843 = vadd.f32 %v794, %v842
        %v844 = vpop.f32.mrf.mxu0
        %v845 = vadd.f32 %v796, %v844
        %846 = vmatmul.bf16.gmra.mxu0 %v656
        %v847 = vpop.f32.mrf.mxu0
        %v848 = vadd.f32 %v799, %v847
        %v849 = vpop.f32.mrf.mxu0
        %v850 = vadd.f32 %v801, %v849
        %851 = vmatmul.bf16.gmra.mxu0 %v659
        %v852 = vpop.f32.mrf.mxu0
        %v853 = vadd.f32 %v804, %v852
        %v854 = vpop.f32.mrf.mxu0
        %v855 = vadd.f32 %v806, %v854
        %856 = vdwg.mxu0
        %s857 = sld [smem:[#allocation2]]
        %vm858 = vcmp.ge.f32.partialorder %v818, 0.0
        %vm859 = vcmp.ge.f32.partialorder %v820, 0.0
        %vm860 = vcmp.ge.f32.partialorder %v823, 0.0
        %vm861 = vcmp.ge.f32.partialorder %v825, 0.0
        %vm862 = vcmp.ge.f32.partialorder %v828, 0.0
        %vm863 = vcmp.ge.f32.partialorder %v830, 0.0
        %vm864 = vcmp.ge.f32.partialorder %v833, 0.0
        %vm865 = vcmp.ge.f32.partialorder %v835, 0.0
        %vm866 = vcmp.ge.f32.partialorder %v838, 0.0
        %vm867 = vcmp.ge.f32.partialorder %v840, 0.0
        %vm868 = vcmp.ge.f32.partialorder %v843, 0.0
        %vm869 = vcmp.ge.f32.partialorder %v845, 0.0
        %vm870 = vcmp.ge.f32.partialorder %v848, 0.0
        %vm871 = vcmp.ge.f32.partialorder %v850, 0.0
        %vm872 = vcmp.ge.f32.partialorder %v853, 0.0
        %vm873 = vcmp.ge.f32.partialorder %v855, 0.0
        %v874 = vstv %s857
        %v875 = vmul.f32 %v874, %v818
        %v876 = vmul.f32 %v874, %v820
        %v877 = vmul.f32 %v874, %v823
        %v878 = vmul.f32 %v874, %v825
        %v879 = vmul.f32 %v874, %v828
        %v880 = vmul.f32 %v874, %v830
        %v881 = vmul.f32 %v874, %v833
        %v882 = vmul.f32 %v874, %v835
        %v883 = vmul.f32 %v874, %v838
        %v884 = vmul.f32 %v874, %v840
        %v885 = vmul.f32 %v874, %v843
        %v886 = vmul.f32 %v874, %v845
        %v887 = vmul.f32 %v874, %v848
        %v888 = vmul.f32 %v874, %v850
        %v889 = vmul.f32 %v874, %v853
        %v890 = vmul.f32 %v874, %v855
        %v891 = vsel %vm858, %v818, %v875
        %v892 = vsel %vm859, %v820, %v876
        %v893 = vsel %vm860, %v823, %v877
        %v894 = vsel %vm861, %v825, %v878
        %v895 = vsel %vm862, %v828, %v879
        %v896 = vsel %vm863, %v830, %v880
        %v897 = vsel %vm864, %v833, %v881
        %v898 = vsel %vm865, %v835, %v882
        %v899 = vsel %vm866, %v838, %v883
        %v900 = vsel %vm867, %v840, %v884
        %v901 = vsel %vm868, %v843, %v885
        %v902 = vsel %vm869, %v845, %v886
        %v903 = vsel %vm870, %v848, %v887
        %v904 = vsel %vm871, %v850, %v888
        %v905 = vsel %vm872, %v853, %v889
        %v906 = vsel %vm873, %v855, %v890
        %907 = vst [vmem:[%s218] sm:$0xff] %v891
        %908 = vst [vmem:[%s218 + $0x8] sm:$0xff] %v892
        %909 = vst [vmem:[%s218 + $0x10] sm:$0xff] %v893
        %910 = vst [vmem:[%s218 + $0x18] sm:$0xff] %v894
        %911 = vst [vmem:[%s218 + $0x20] sm:$0xff] %v895
        %912 = vst [vmem:[%s218 + $0x28] sm:$0xff] %v896
        %913 = vst [vmem:[%s218 + $0x30] sm:$0xff] %v897
        %914 = vst [vmem:[%s218 + $0x38] sm:$0xff] %v898
        %915 = vst [vmem:[%s218 + $0x40] sm:$0xff] %v899
        %916 = vst [vmem:[%s218 + $0x48] sm:$0xff] %v900
        %917 = vst [vmem:[%s218 + $0x50] sm:$0xff] %v901
        %918 = vst [vmem:[%s218 + $0x58] sm:$0xff] %v902
        %919 = vst [vmem:[%s218 + $0x60] sm:$0xff] %v903
        %920 = vst [vmem:[%s218 + $0x68] sm:$0xff] %v904
        %921 = vst [vmem:[%s218 + $0x70] sm:$0xff] %v905
        %922 = vst [vmem:[%s218 + $0x78] sm:$0xff] %v906
        %s923 = sand.u32 %s132, 1
        %s924 = scalar_lea.sflag [#allocation4], %s923
        %s925 = sand.u32 %s132, 1
        %s926 = smul.addr %s925, 128
        %s927 = scalar_lea.vmem [#allocation3], %s926
        // Predicated region
        $region37: #{tpu_custom_call.1} parent=35 // pred_check
          %p928 = pneg %p142
        $region38: #{tpu_custom_call.1} parent=35 // pred_check_branch
          %930 = sbr.rel (%p928) target = $region40
        $region39: #{tpu_custom_call.1} parent=35 // pred_region
          %s931 = smul.u32 16, %s24
          %933 = vsyncadd %s924, 0
          %s934 = smul.addr %s23, 64
          %s935 = sadd.s32 %s931, %s934
          %s936 = smul.addr %s935, 8
          %s937 = scalar_lea.hbm %s4, %s936
          %s938 = sshll.u32 %s927, 4
          %s939 = int_to_ptr.vmem [resolvable:$true] %s938
          %s940 = sshll.u32 %s937, 4
          %s941 = int_to_ptr.hbm [resolvable:$true] %s940
          %946 = dma.vmem_to_hbm [thread:$0]  %s939, 2048, %s941, %s924, 128, 128, 8
        $region40: #{tpu_custom_call.1} parent=35 // pred_fallthru
          _
      $region36: #{tpu_custom_call.1} parent=5 // pred_fallthru
        _
      %p947 = scmp.le.s32.totalorder 2, %s14
      // Predicated region
      $region41: #{tpu_custom_call.1} parent=5 // pred_check
        %p948 = pneg %p947
      $region42: #{tpu_custom_call.1} parent=5 // pred_check_branch
        %950 = sbr.rel (%p948) target = $region44
      $region43: #{tpu_custom_call.1} parent=5 // pred_region
        %s951 = ssub.s32 %s14, 2
        // Predicated region
        $region45: #{tpu_custom_call.1} parent=43 // pred_check
          %p952 = pneg %p148
        $region46: #{tpu_custom_call.1} parent=43 // pred_check_branch
          %954 = sbr.rel (%p952) target = $region48
        $region47: #{tpu_custom_call.1} parent=43 // pred_region
          %s955 = sand.u32 %s133, 1
          %s956 = scalar_lea.sflag [#allocation4], %s955
          %s957 = sand.u32 %s133, 1
          %s958 = smul.addr %s957, 128
          %s959 = scalar_lea.vmem [#allocation3], %s958
          %961 = dma.done %s956, 2048
        $region48: #{tpu_custom_call.1} parent=43 // pred_fallthru
          _
      $region44: #{tpu_custom_call.1} parent=5 // pred_fallthru
        _
    $region6: #{tpu_custom_call.1} parent=1 // loop_footer
      %s18 = sadd.s32 1, %s14
    $region7: #{tpu_custom_call.1} parent=1 // loop_footer_branch
      %13 = sbr.rel target = $region3
    $region8: #{tpu_custom_call.1} parent=1 // loop_exit
      _
    %962 = vsyncpa [#allocation4], 1
    %s963 = scalar_lea.sflag [#allocation4], 1
    %964 = vsyncpa %s963, 1

</llo_original>
